<compile_context>
chip_gen: v5e
topology: v5e:2x2
jax: 0.10.0
libtpu: 0.0.40
codegen_flags: <defaults>
</compile_context>

<pallas_src>
import jax
import jax.numpy as jnp
from jax.experimental import pallas as pl
from jax.experimental.pallas import tpu as pltpu


def _round_up(x, m):
    return ((x + m - 1) // m) * m


def _cdiv(a, b):
    return -(-a // b)


def _vmem_limit_bytes():
    """Generation-aware VMEM cap: ~3/4 of physical (48 MiB v7x, 96 MiB v5e/v6e)."""
    cap = 64 * 1024 * 1024
    try:
        cap = int(getattr(pltpu.get_tpu_info(), "vmem_capacity_bytes", cap))
    except Exception:
        pass
    return max(32 * 1024 * 1024, cap * 3 // 4)


# --------------------------------------------------------------------------
# video normalization: uint8 -> float in [0, 1], lane-dense 2D tiling
# --------------------------------------------------------------------------
def _norm_kernel(x_ref, o_ref):
    o_ref[...] = (x_ref[...].astype(jnp.float32) * (1.0 / 255.0)).astype(o_ref.dtype)


def normalize_video(batch_u8, out_dtype=jnp.float32):
    # out_dtype=jnp.bfloat16 halves output HBM traffic if the downstream
    # contract allows it; default f32 matches the original module.
    shape = batch_u8.shape
    total = 1
    for s in shape:
        total *= int(s)

    L = 128
    for cand in (4096, 2048, 1024, 512, 256, 128):
        if total % cand == 0:
            L = cand
            break
    pad = (-total) % L
    flat = batch_u8.reshape(-1)
    if pad:
        flat = jnp.pad(flat, (0, pad))
    R = (total + pad) // L

    vmem_limit = _vmem_limit_bytes()
    out_bytes = jnp.dtype(out_dtype).itemsize
    per_row = L * (1 + out_bytes) * 2          # double-buffered in + out
    tr_max = max(8, (vmem_limit - (8 << 20)) // per_row)
    tr = min(R, tr_max)
    if R > 16:                                 # >=2 blocks -> both v7x cores busy
        tr = min(tr, _round_up(_cdiv(R, 2), 8))
    if tr < R:
        tr = max(8, (tr // 8) * 8)

    out = pl.pallas_call(
        _norm_kernel,
        out_shape=jax.ShapeDtypeStruct((R, L), out_dtype),
        grid=(pl.cdiv(R, tr),),
        in_specs=[pl.BlockSpec((tr, L), lambda r: (r, 0))],
        out_specs=pl.BlockSpec((tr, L), lambda r: (r, 0)),
        compiler_params=pltpu.CompilerParams(
            dimension_semantics=("parallel",),
            vmem_limit_bytes=vmem_limit,
        ),
    )(flat.reshape(R, L))
    out = out.reshape(-1)
    if pad:
        out = out[:total]
    return out.reshape(shape)


# --------------------------------------------------------------------------
# fused mask + optical-flow kernel, one grid step per batch element:
#   * one contiguous (C, T, H, W) uint8 DMA per b (frames read from HBM once)
#   * mask: zero-padded 3x3 conv (C -> 1) + sigmoid, weights in SMEM
#   * flow: Lucas-Kanade style flow frame t-1 -> t, grayscale loop carry
# --------------------------------------------------------------------------
def _make_mask_flow_kernel(C, T, H, W):
    inv255 = 1.0 / 255.0

    def kernel(x_ref, wb_ref, mask_ref, flow_ref):
        # ---- loop-invariant setup (hoisted out of the T loop) -------------
        row = jax.lax.broadcasted_iota(jnp.int32, (H, W), 0)
        col = jax.lax.broadcasted_iota(jnp.int32, (H, W), 1)
        rv = {0: None, 1: row >= 1, -1: row < (H - 1)}
        cv = {0: None, 1: col >= 1, -1: col < (W - 1)}

        def _and(a, b):
            if a is None:
                return b
            if b is None:
                return a
            return a & b

        bmask = {(dy, dx): _and(rv[dy], cv[dx])
                 for dy in (-1, 0, 1) for dx in (-1, 0, 1)}
        ix_valid = _and(cv[1], cv[-1])   # interior columns
        iy_valid = _and(rv[1], rv[-1])   # interior rows

        # SMEM conv weights + bias read once for the whole batch element
        wv = [wb_ref[i] for i in range(C * 9)]
        bias = wb_ref[C * 9]

        def shift2d(a, dy, dx):
            # out[y, x] = a[y - dy, x - dx], zero-filled outside the frame
            out = a
            if dy != 0:
                out = pltpu.roll(out, shift=dy % H, axis=0)
            if dx != 0:
                out = pltpu.roll(out, shift=dx % W, axis=1)
            m = bmask[(dy, dx)]
            return out if m is None else jnp.where(m, out, 0.0)

        def body(t, g_prev):
            # uint8 frame -> normalized f32 once, in-register
            x = x_ref[0, :, t, :, :].astype(jnp.float32) * inv255   # (C, H, W)

            # ---- mask head (MultiPreprocess stand-in): 3x3 conv + sigmoid
            # TODO(synk): real YOLO MultiPreprocess weights are unavailable.
            acc = None
            for ky in range(3):
                for kx in range(3):
                    m = x[0] * wv[ky * 3 + kx]
                    for c in range(1, C):
                        m = m + x[c] * wv[c * 9 + ky * 3 + kx]
                    s = shift2d(m, 1 - ky, 1 - kx)
                    acc = s if acc is None else acc + s
            mask_ref[0, 0, t, :, :] = jax.nn.sigmoid(acc + bias)

            # ---- optical flow (frame t-1 -> frame t); flow[:, :, 0] = 0 ---
            # TODO(synk): real OpticalFlow is a RAFT network (no weights);
            # this LK-style dense flow keeps the (B, 2, T, H, W) contract.
            g_cur = jnp.mean(x, axis=0)                              # (H, W)

            @pl.when(t == 0)
            def _():
                flow_ref[0, 0, 0, :, :] = jnp.zeros((H, W), jnp.float32)
                flow_ref[0, 1, 0, :, :] = jnp.zeros((H, W), jnp.float32)

            @pl.when(t > 0)
            def _():
                ix = 0.5 * (shift2d(g_prev, 0, -1) - shift2d(g_prev, 0, 1))
                iy = 0.5 * (shift2d(g_prev, -1, 0) - shift2d(g_prev, 1, 0))
                # clamp (zero) gradients at the image border
                ix = jnp.where(ix_valid, ix, 0.0)
                iy = jnp.where(iy_valid, iy, 0.0)
                it = g_cur - g_prev
                inv_den = pl.reciprocal(ix * ix + iy * iy + 1e-3, approx=True)
                flow_ref[0, 0, t, :, :] = -(it * ix) * inv_den
                flow_ref[0, 1, t, :, :] = -(it * iy) * inv_den

            return g_cur

        jax.lax.fori_loop(0, T, body, jnp.zeros((H, W), jnp.float32),
                          unroll=(T if T <= 8 else 1))

    return kernel


def compute_mask_and_flow(batch_u8, mask_w, mask_b):
    B, C, T, H, W = batch_u8.shape
    # conv weights + bias as a tiny flat SMEM vector (scalars in-kernel)
    wb = jnp.concatenate(
        [mask_w.reshape(-1).astype(jnp.float32),
         mask_b.reshape(-1).astype(jnp.float32)])
    mask, flow = pl.pallas_call(
        _make_mask_flow_kernel(C, T, H, W),
        out_shape=(
            jax.ShapeDtypeStruct((B, 1, T, H, W), jnp.float32),
            jax.ShapeDtypeStruct((B, 2, T, H, W), jnp.float32),
        ),
        grid=(B,),     # NOTE: B=1 leaves one v7x TensorCore idle
        in_specs=[
            pl.BlockSpec((1, C, T, H, W), lambda b: (b, 0, 0, 0, 0)),
            pl.BlockSpec(memory_space=pltpu.MemorySpace.SMEM),
        ],
        out_specs=(
            pl.BlockSpec((1, 1, T, H, W), lambda b: (b, 0, 0, 0, 0)),
            pl.BlockSpec((1, 2, T, H, W), lambda b: (b, 0, 0, 0, 0)),
        ),
        compiler_params=pltpu.CompilerParams(
            dimension_semantics=("parallel",),
            vmem_limit_bytes=_vmem_limit_bytes(),
        ),
    )(batch_u8, wb)
    return mask, flow


# --------------------------------------------------------------------------
# pose head: tiled MXU matmul, weight VMEM-resident when it fits,
#            K-accumulated otherwise, N padded to 128 lanes
# --------------------------------------------------------------------------
def _make_pose_kernel(tk, weight_resident):
    def kernel(f_ref, w_ref, o_ref, acc_ref):
        k = pl.program_id(1)

        @pl.when(k == 0)
        def _():
            acc_ref[...] = jnp.zeros_like(acc_ref)

        # uint8 0..255 is exact in bf16: single cast, no f32 intermediate
        a = f_ref[...].astype(jnp.bfloat16)
        if weight_resident:
            off = pl.multiple_of(k * tk, tk)
            w = w_ref[pl.ds(off, tk), :]
        else:
            w = w_ref[...]
        acc_ref[...] += jnp.dot(a, w, preferred_element_type=jnp.float32)

        @pl.when(k == pl.num_programs(1) - 1)
        def _():
            # TODO(synk): verify sigmoid (coords normalized to [0,1]) against
            # the real MultiPreprocess pose head once weights are available.
            o_ref[...] = jax.nn.sigmoid(acc_ref[...])

    return kernel


def compute_pose(batch_u8, pose_w, num_kp):
    B, C, T, H, W = batch_u8.shape
    M, K, N = B * T, C * H * W, 2 * num_kp
    NP = _round_up(max(N, 1), 128)              # lane-dense output columns
    vmem_limit = _vmem_limit_bytes()

    # fold 1/255 into the (tiny) weight, pad N, bf16 for the MXU
    # (bf16 weight quantization: ~2^-8 relative error vs an f32 reference)
    w = jnp.zeros((K, NP), jnp.float32)
    w = w.at[:, :N].set(pose_w.astype(jnp.float32) * (1.0 / 255.0))
    w = w.astype(jnp.bfloat16)

    # per-frame feature matrix; transpose is done on uint8 (4x cheaper than f32)
    # TODO(synk): an in-kernel (b, t) gather would remove this extra uint8
    # HBM read+write entirely (lower priority than weight residency).
    feats = batch_u8.transpose(0, 2, 1, 3, 4).reshape(M, K)

    # m tiling: >=2 tiles when M is large enough so both v7x cores get work
    if M <= 64:
        tm = M
    else:
        tm = min(256, _round_up(_cdiv(M, 2), 32))

    # weight-residency gate (v7x 64 MiB VMEM is the binding constraint);
    # weight is counted double-buffered to stay conservative.
    w_bytes = K * NP * 2
    budget = max(vmem_limit - (12 << 20), vmem_limit // 2)

    def fits_resident(tk_):
        need = (2 * w_bytes            # resident bf16 weight
                + 2 * tm * tk_         # uint8 feats tile, double-buffered
                + 2 * tm * NP * 4      # f32 output tile, double-buffered
                + tm * NP * 4)         # f32 accumulator scratch
        return need <= budget

    if fits_resident(K):
        tk, resident = K, True                  # single K step, weight resident
    else:
        tk = K
        for cand in (2048, 1024, 512, 256, 128):
            if K % cand == 0:
                tk = cand
                break
        resident = fits_resident(tk)            # resident weight, K-sliced dot

    if resident:
        w_spec = pl.BlockSpec((K, NP), lambda m, k: (0, 0))   # fetched once
    else:
        w_spec = pl.BlockSpec((tk, NP), lambda m, k: (k, 0))  # streamed per k

    out = pl.pallas_call(
        _make_pose_kernel(tk, resident),
        out_shape=jax.ShapeDtypeStruct((M, NP), jnp.float32),
        grid=(pl.cdiv(M, tm), K // tk),
        in_specs=[
            pl.BlockSpec((tm, tk), lambda m, k: (m, k)),
            w_spec,
        ],
        out_specs=pl.BlockSpec((tm, NP), lambda m, k: (m, 0)),
        scratch_shapes=[pltpu.VMEM((tm, NP), jnp.float32)],
        compiler_params=pltpu.CompilerParams(
            dimension_semantics=("parallel", "arbitrary"),
            vmem_limit_bytes=vmem_limit,
        ),
    )(feats, w)
    pose = out[:, :N].reshape(B, T, 2, num_kp).transpose(0, 2, 1, 3)
    return pose                                  # (B, 2, T, K)


# --------------------------------------------------------------------------
# Preprocess.forward equivalent
# --------------------------------------------------------------------------
def shape_check(check):
    b, c, t, h, w = check[0].shape
    for ck in check:
        if ck.ndim == 1:
            assert ck.shape[0] == b
        else:
            assert ck.shape[2] == t


def preprocess_forward(batch, labels, batch_idx, params, num_kp):
    del batch_idx  # only used by save_img in the original module

    # yolo_model stand-in: normalized video, pass-through labels, mask, pose
    video = normalize_video(batch)
    mask, optical_flow = compute_mask_and_flow(
        batch, params["mask_w"], params["mask_b"])
    pose = compute_pose(batch, params["pose_w"], num_kp)

    shape_check([video, labels, mask, pose])
    # TODO(synk): save_img writes PNGs to disk; no Pallas equivalent for file I/O.
    shape_check([video, optical_flow])

    return (video, labels, optical_flow, mask, pose)


if __name__ == "__main__":
    # small but lane-friendly shapes: W = 128 keeps every store lane-dense
    B, C, T, H, W = 2, 3, 4, 16, 128
    K = 17  # COCO-style keypoints

    key = jax.random.PRNGKey(0)
    kb, kw, kp, kl = jax.random.split(key, 4)

    batch = jax.random.randint(kb, (B, C, T, H, W), 0, 256,
                               dtype=jnp.int32).astype(jnp.uint8)
    labels = jax.random.randint(kl, (B,), 0, 10).astype(jnp.int32)

    params = {
        "mask_w": jax.random.normal(kw, (C, 3, 3), jnp.float32) * 0.1,
        "mask_b": jnp.zeros((1,), jnp.float32),
        "pose_w": jax.random.normal(kp, (C * H * W, 2 * K), jnp.float32) * 0.02,
    }

    video, labels_out, flow, mask, pose = preprocess_forward(
        batch, labels, 0, params, K)
    jax.block_until_ready((video, labels_out, flow, mask, pose))

    assert video.shape == (B, C, T, H, W) and video.dtype == jnp.float32
    assert labels_out.shape == (B,)
    assert flow.shape == (B, 2, T, H, W)
    assert mask.shape == (B, 1, T, H, W)
    assert pose.shape == (B, 2, T, K)
    assert bool(jnp.all((mask >= 0) & (mask <= 1)))
    assert bool(jnp.all((pose >= 0) & (pose <= 1)))
    assert bool(jnp.all(jnp.isfinite(flow)))
    assert bool(jnp.all(jnp.abs(flow[:, :, 0]) == 0.0))
    assert bool(jnp.all(jnp.abs(video * 255.0 - batch.astype(jnp.float32)) < 1e-3))

    print("KERNEL_OK")
</pallas_src>

<mosaic_0001>
module attributes {stable_mosaic.version = 11 : i64} {
  func.func @_norm_kernel(%arg0: i32, %arg1: memref<12x4096xi8, #tpu.memory_space<vmem>>, %arg2: memref<12x4096xf32, #tpu.memory_space<vmem>>) attributes {dimension_semantics = [#tpu.dimension_semantics<parallel>], iteration_bounds = array<i64: 1>, scalar_prefetch = 0 : i64, scratch_operands = 0 : i64, tpu.core_type = #tpu.core_type<tc>, window_params = [{transform_indices = @transform_0, window_bounds = array<i64: 12, 4096>}, {transform_indices = @transform_1, window_bounds = array<i64: 12, 4096>}]} {
    %c0 = arith.constant 0 : index
    %c0_0 = arith.constant 0 : index
    %0 = vector.load %arg1[%c0, %c0_0] : memref<12x4096xi8, #tpu.memory_space<vmem>>, vector<12x4096xi8>
    %1 = arith.uitofp %0 : vector<12x4096xi8> to vector<12x4096xf32>
    %cst = arith.constant 0.00392156886 : f32
    %2 = vector.broadcast %cst : f32 to vector<12x4096xf32>
    %3 = arith.mulf %1, %2 : vector<12x4096xf32>
    %c0_1 = arith.constant 0 : index
    %c0_2 = arith.constant 0 : index
    %4 = vector.load %arg2[%c0_1, %c0_2] : memref<12x4096xf32, #tpu.memory_space<vmem>>, vector<12x4096xf32>
    tpu.vector_store %arg2[%c0_1, %c0_2], %3 {strides = array<i32>} : memref<12x4096xf32, #tpu.memory_space<vmem>>, vector<12x4096xf32>,
    return
  }
  func.func @transform_0(%arg0: i32) -> (i32, i32) {
    %c0_i32 = arith.constant 0 : i32
    %c0_i32_0 = arith.constant 0 : i32
    return %arg0, %c0_i32 : i32, i32
  }
  func.func @transform_1(%arg0: i32) -> (i32, i32) {
    %c0_i32 = arith.constant 0 : i32
    %c0_i32_0 = arith.constant 0 : i32
    return %arg0, %c0_i32 : i32, i32
  }
}

</mosaic_0001>

<llo_original>
// kernel: tpu_custom_call.1
$region0: #{tpu_custom_call.1}
  #allocation0 [shape = 'u32[]', space=smem, size = 0x4, offset = 0x4, fixed_abs, tag = 'smem constant byte address 0x4 - core index']
  #allocation1 [shape = 'u32[72,128]{1,0:T(1,128)}', space=vmem, size = 0x9000, scoped, tag = 'internal scratch']
  %s0 = inlined_call_operand.hbm [shape: u8[12,4096], index: 0, kind: input, shape index: {}]
  %s1 = inlined_call_operand.hbm [shape: f32[12,4096], index: 1, kind: output, shape index: {}]
  %s2 = sld [smem:[#allocation0]]
  $region18: #{tpu_custom_call.1} parent=0
    _
  %s4 = ssub.s32 1, %s2
  %s5 = scalar_select 0, %s4, %s2
  $region1: #{tpu_custom_call.1} parent=0
    #allocation2 [shape = 'u8[65536]{0}', space=vmem, size = 0x10000, scoped, tag = 'input window, operand 0, single buffered']
    #allocation3 [shape = 's32[1]{0}', space=sflag, size = 0x4, scoped, tag = 'scoped memory for tpu_custom_call.1']
    #allocation4 [shape = 's32[1]{0}', space=sflag, size = 0x4, scoped, tag = 'scoped memory for tpu_custom_call.1']
    #allocation5 [shape = 'u8[262144]{0}', space=vmem, size = 0x40000, scoped, tag = 'output window, operand 0, single buffered']
    %6 = vsyncpa [#allocation3], 0
    %7 = vsyncpa [#allocation4], 0
    // Predicated region
    $region2: #{tpu_custom_call.1} parent=1 // pred_check
      _
    $region3: #{tpu_custom_call.1} parent=1 // pred_check_branch
      %9 = sbr.rel (0) target = $region5
    $region4: #{tpu_custom_call.1} parent=1 // pred_region
      %11 = vsyncadd [#allocation3], 0
      %s12 = sshll.u32 %s0, 4
      %s13 = int_to_ptr.hbm [resolvable:$true] %s12
      %s14 = sshll.u32 [#allocation2], 4
      %s15 = int_to_ptr.vmem [resolvable:$true] %s14
      %20 = dma.hbm_to_vmem [thread:$0]  %s13, 2048, %s15, [#allocation3], 1024, 1024, 64
    $region5: #{tpu_custom_call.1} parent=1 // pred_fallthru
      _
    // Predicated region
    $region6: #{tpu_custom_call.1} parent=1 // pred_check
      _
    $region7: #{tpu_custom_call.1} parent=1 // pred_check_branch
      %22 = sbr.rel (0) target = $region9
    $region8: #{tpu_custom_call.1} parent=1 // pred_region
      %24 = dma.done [#allocation3], 2048
    $region9: #{tpu_custom_call.1} parent=1 // pred_fallthru
      _
    %v25 = vld [vmem:[#allocation2] sm:$0xff]
    %v26 = vld [vmem:[#allocation2 + $0x8] sm:$0xff]
    %v27 = vld [vmem:[#allocation2 + $0x10] sm:$0xff]
    %v28 = vld [vmem:[#allocation2 + $0x18] sm:$0xff]
    %v29 = vld [vmem:[#allocation2 + $0x20] sm:$0xff]
    %v30 = vld [vmem:[#allocation2 + $0x28] sm:$0xff]
    %v31 = vld [vmem:[#allocation2 + $0x30] sm:$0xff]
    %v32 = vld [vmem:[#allocation2 + $0x38] sm:$0xff]
    %v33 = vld [vmem:[#allocation2 + $0x40] sm:$0x55]
    %v34 = vld [vmem:[#allocation2 + $0x48] sm:$0x55]
    %v35 = vld [vmem:[#allocation2 + $0x50] sm:$0x55]
    %v36 = vld [vmem:[#allocation2 + $0x58] sm:$0x55]
    %v37 = vld [vmem:[#allocation2 + $0x60] sm:$0x55]
    %v38 = vld [vmem:[#allocation2 + $0x68] sm:$0x55]
    %v39 = vld [vmem:[#allocation2 + $0x70] sm:$0x55]
    %v40 = vld [vmem:[#allocation2 + $0x78] sm:$0x55]
    %v41 = vunpack.c.0.s8 %v25
    %v42 = vunpack.c.1.s8 %v25
    %v43 = vunpack.c.2.s8 %v25
    %v44 = vunpack.c.3.s8 %v25
    %v45 = vunpack.c.0.s8 %v26
    %v46 = vunpack.c.1.s8 %v26
    %v47 = vunpack.c.2.s8 %v26
    %v48 = vunpack.c.3.s8 %v26
    %v49 = vunpack.c.0.s8 %v27
    %v50 = vunpack.c.1.s8 %v27
    %v51 = vunpack.c.2.s8 %v27
    %v52 = vunpack.c.3.s8 %v27
    %v53 = vunpack.c.0.s8 %v28
    %v54 = vunpack.c.1.s8 %v28
    %v55 = vunpack.c.2.s8 %v28
    %v56 = vunpack.c.3.s8 %v28
    %v57 = vunpack.c.0.s8 %v29
    %v58 = vunpack.c.1.s8 %v29
    %v59 = vunpack.c.2.s8 %v29
    %v60 = vunpack.c.3.s8 %v29
    %v61 = vunpack.c.0.s8 %v30
    %v62 = vunpack.c.1.s8 %v30
    %v63 = vunpack.c.2.s8 %v30
    %v64 = vunpack.c.3.s8 %v30
    %v65 = vunpack.c.0.s8 %v31
    %v66 = vunpack.c.1.s8 %v31
    %v67 = vunpack.c.2.s8 %v31
    %v68 = vunpack.c.3.s8 %v31
    %v69 = vunpack.c.0.s8 %v32
    %v70 = vunpack.c.1.s8 %v32
    %v71 = vunpack.c.2.s8 %v32
    %v72 = vunpack.c.3.s8 %v32
    %v73 = vunpack.c.0.s8 %v33
    %v74 = vunpack.c.1.s8 %v33
    %v75 = vunpack.c.2.s8 %v33
    %v76 = vunpack.c.3.s8 %v33
    %v77 = vunpack.c.0.s8 %v34
    %v78 = vunpack.c.1.s8 %v34
    %v79 = vunpack.c.2.s8 %v34
    %v80 = vunpack.c.3.s8 %v34
    %v81 = vunpack.c.0.s8 %v35
    %v82 = vunpack.c.1.s8 %v35
    %v83 = vunpack.c.2.s8 %v35
    %v84 = vunpack.c.3.s8 %v35
    %v85 = vunpack.c.0.s8 %v36
    %v86 = vunpack.c.1.s8 %v36
    %v87 = vunpack.c.2.s8 %v36
    %v88 = vunpack.c.3.s8 %v36
    %v89 = vunpack.c.0.s8 %v37
    %v90 = vunpack.c.1.s8 %v37
    %v91 = vunpack.c.2.s8 %v37
    %v92 = vunpack.c.3.s8 %v37
    %v93 = vunpack.c.0.s8 %v38
    %v94 = vunpack.c.1.s8 %v38
    %v95 = vunpack.c.2.s8 %v38
    %v96 = vunpack.c.3.s8 %v38
    %v97 = vunpack.c.0.s8 %v39
    %v98 = vunpack.c.1.s8 %v39
    %v99 = vunpack.c.2.s8 %v39
    %v100 = vunpack.c.3.s8 %v39
    %v101 = vunpack.c.0.s8 %v40
    %v102 = vunpack.c.1.s8 %v40
    %v103 = vunpack.c.2.s8 %v40
    %v104 = vunpack.c.3.s8 %v40
    %v105 = vand.u32 %v41, 255
    %v106 = vand.u32 %v42, 255
    %v107 = vand.u32 %v43, 255
    %v108 = vand.u32 %v44, 255
    %v109 = vand.u32 %v45, 255
    %v110 = vand.u32 %v46, 255
    %v111 = vand.u32 %v47, 255
    %v112 = vand.u32 %v48, 255
    %v113 = vand.u32 %v49, 255
    %v114 = vand.u32 %v50, 255
    %v115 = vand.u32 %v51, 255
    %v116 = vand.u32 %v52, 255
    %v117 = vand.u32 %v53, 255
    %v118 = vand.u32 %v54, 255
    %v119 = vand.u32 %v55, 255
    %v120 = vand.u32 %v56, 255
    %v121 = vand.u32 %v57, 255
    %v122 = vand.u32 %v58, 255
    %v123 = vand.u32 %v59, 255
    %v124 = vand.u32 %v60, 255
    %v125 = vand.u32 %v61, 255
    %v126 = vand.u32 %v62, 255
    %v127 = vand.u32 %v63, 255
    %v128 = vand.u32 %v64, 255
    %v129 = vand.u32 %v65, 255
    %v130 = vand.u32 %v66, 255
    %v131 = vand.u32 %v67, 255
    %v132 = vand.u32 %v68, 255
    %v133 = vand.u32 %v69, 255
    %v134 = vand.u32 %v70, 255
    %v135 = vand.u32 %v71, 255
    %v136 = vand.u32 %v72, 255
    %v137 = vand.u32 %v73, 255
    %v138 = vand.u32 %v74, 255
    %v139 = vand.u32 %v75, 255
    %v140 = vand.u32 %v76, 255
    %v141 = vand.u32 %v77, 255
    %v142 = vand.u32 %v78, 255
    %v143 = vand.u32 %v79, 255
    %v144 = vand.u32 %v80, 255
    %v145 = vand.u32 %v81, 255
    %v146 = vand.u32 %v82, 255
    %v147 = vand.u32 %v83, 255
    %v148 = vand.u32 %v84, 255
    %v149 = vand.u32 %v85, 255
    %v150 = vand.u32 %v86, 255
    %v151 = vand.u32 %v87, 255
    %v152 = vand.u32 %v88, 255
    %v153 = vand.u32 %v89, 255
    %v154 = vand.u32 %v90, 255
    %v155 = vand.u32 %v91, 255
    %v156 = vand.u32 %v92, 255
    %v157 = vand.u32 %v93, 255
    %v158 = vand.u32 %v94, 255
    %v159 = vand.u32 %v95, 255
    %v160 = vand.u32 %v96, 255
    %v161 = vand.u32 %v97, 255
    %v162 = vand.u32 %v98, 255
    %v163 = vand.u32 %v99, 255
    %v164 = vand.u32 %v100, 255
    %v165 = vand.u32 %v101, 255
    %v166 = vand.u32 %v102, 255
    %v167 = vand.u32 %v103, 255
    %v168 = vand.u32 %v104, 255
    %v169 = vcvt.s32.f32 %v105
    %v170 = vcvt.s32.f32 %v106
    %v171 = vcvt.s32.f32 %v107
    %v172 = vcvt.s32.f32 %v108
    %v173 = vcvt.s32.f32 %v109
    %v174 = vcvt.s32.f32 %v110
    %v175 = vcvt.s32.f32 %v111
    %v176 = vcvt.s32.f32 %v112
    %v177 = vcvt.s32.f32 %v113
    %v178 = vcvt.s32.f32 %v114
    %v179 = vcvt.s32.f32 %v115
    %v180 = vcvt.s32.f32 %v116
    %v181 = vcvt.s32.f32 %v117
    %v182 = vcvt.s32.f32 %v118
    %v183 = vcvt.s32.f32 %v119
    %v184 = vcvt.s32.f32 %v120
    %v185 = vcvt.s32.f32 %v121
    %v186 = vcvt.s32.f32 %v122
    %v187 = vcvt.s32.f32 %v123
    %v188 = vcvt.s32.f32 %v124
    %v189 = vcvt.s32.f32 %v125
    %v190 = vcvt.s32.f32 %v126
    %v191 = vcvt.s32.f32 %v127
    %v192 = vcvt.s32.f32 %v128
    %v193 = vcvt.s32.f32 %v129
    %v194 = vcvt.s32.f32 %v130
    %v195 = vcvt.s32.f32 %v131
    %v196 = vcvt.s32.f32 %v132
    %v197 = vcvt.s32.f32 %v133
    %v198 = vcvt.s32.f32 %v134
    %v199 = vcvt.s32.f32 %v135
    %v200 = vcvt.s32.f32 %v136
    %v201 = vcvt.s32.f32 %v137
    %v202 = vcvt.s32.f32 %v138
    %v203 = vcvt.s32.f32 %v139
    %v204 = vcvt.s32.f32 %v140
    %v205 = vcvt.s32.f32 %v141
    %v206 = vcvt.s32.f32 %v142
    %v207 = vcvt.s32.f32 %v143
    %v208 = vcvt.s32.f32 %v144
    %v209 = vcvt.s32.f32 %v145
    %v210 = vcvt.s32.f32 %v146
    %v211 = vcvt.s32.f32 %v147
    %v212 = vcvt.s32.f32 %v148
    %v213 = vcvt.s32.f32 %v149
    %v214 = vcvt.s32.f32 %v150
    %v215 = vcvt.s32.f32 %v151
    %v216 = vcvt.s32.f32 %v152
    %v217 = vcvt.s32.f32 %v153
    %v218 = vcvt.s32.f32 %v154
    %v219 = vcvt.s32.f32 %v155
    %v220 = vcvt.s32.f32 %v156
    %v221 = vcvt.s32.f32 %v157
    %v222 = vcvt.s32.f32 %v158
    %v223 = vcvt.s32.f32 %v159
    %v224 = vcvt.s32.f32 %v160
    %v225 = vcvt.s32.f32 %v161
    %v226 = vcvt.s32.f32 %v162
    %v227 = vcvt.s32.f32 %v163
    %v228 = vcvt.s32.f32 %v164
    %v229 = vcvt.s32.f32 %v165
    %v230 = vcvt.s32.f32 %v166
    %v231 = vcvt.s32.f32 %v167
    %v232 = vcvt.s32.f32 %v168
    %v233 = vmul.f32 %v169, 0.003921569
    %v234 = vmul.f32 %v170, 0.003921569
    %v235 = vmul.f32 %v171, 0.003921569
    %v236 = vmul.f32 %v172, 0.003921569
    %v237 = vmul.f32 %v173, 0.003921569
    %v238 = vmul.f32 %v174, 0.003921569
    %v239 = vmul.f32 %v175, 0.003921569
    %v240 = vmul.f32 %v176, 0.003921569
    %v241 = vmul.f32 %v177, 0.003921569
    %v242 = vmul.f32 %v178, 0.003921569
    %v243 = vmul.f32 %v179, 0.003921569
    %v244 = vmul.f32 %v180, 0.003921569
    %v245 = vmul.f32 %v181, 0.003921569
    %v246 = vmul.f32 %v182, 0.003921569
    %v247 = vmul.f32 %v183, 0.003921569
    %v248 = vmul.f32 %v184, 0.003921569
    %v249 = vmul.f32 %v185, 0.003921569
    %v250 = vmul.f32 %v186, 0.003921569
    %v251 = vmul.f32 %v187, 0.003921569
    %v252 = vmul.f32 %v188, 0.003921569
    %v253 = vmul.f32 %v189, 0.003921569
    %v254 = vmul.f32 %v190, 0.003921569
    %v255 = vmul.f32 %v191, 0.003921569
    %v256 = vmul.f32 %v192, 0.003921569
    %v257 = vmul.f32 %v193, 0.003921569
    %v258 = vmul.f32 %v194, 0.003921569
    %v259 = vmul.f32 %v195, 0.003921569
    %v260 = vmul.f32 %v196, 0.003921569
    %v261 = vmul.f32 %v197, 0.003921569
    %v262 = vmul.f32 %v198, 0.003921569
    %v263 = vmul.f32 %v199, 0.003921569
    %v264 = vmul.f32 %v200, 0.003921569
    %v265 = vmul.f32 %v201, 0.003921569
    %v266 = vmul.f32 %v202, 0.003921569
    %v267 = vmul.f32 %v203, 0.003921569
    %v268 = vmul.f32 %v204, 0.003921569
    %v269 = vmul.f32 %v205, 0.003921569
    %v270 = vmul.f32 %v206, 0.003921569
    %v271 = vmul.f32 %v207, 0.003921569
    %v272 = vmul.f32 %v208, 0.003921569
    %v273 = vmul.f32 %v209, 0.003921569
    %v274 = vmul.f32 %v210, 0.003921569
    %v275 = vmul.f32 %v211, 0.003921569
    %v276 = vmul.f32 %v212, 0.003921569
    %v277 = vmul.f32 %v213, 0.003921569
    %v278 = vmul.f32 %v214, 0.003921569
    %v279 = vmul.f32 %v215, 0.003921569
    %v280 = vmul.f32 %v216, 0.003921569
    %v281 = vmul.f32 %v217, 0.003921569
    %v282 = vmul.f32 %v218, 0.003921569
    %v283 = vmul.f32 %v219, 0.003921569
    %v284 = vmul.f32 %v220, 0.003921569
    %v285 = vmul.f32 %v221, 0.003921569
    %v286 = vmul.f32 %v222, 0.003921569
    %v287 = vmul.f32 %v223, 0.003921569
    %v288 = vmul.f32 %v224, 0.003921569
    %v289 = vmul.f32 %v225, 0.003921569
    %v290 = vmul.f32 %v226, 0.003921569
    %v291 = vmul.f32 %v227, 0.003921569
    %v292 = vmul.f32 %v228, 0.003921569
    %v293 = vmul.f32 %v229, 0.003921569
    %v294 = vmul.f32 %v230, 0.003921569
    %v295 = vmul.f32 %v231, 0.003921569
    %v296 = vmul.f32 %v232, 0.003921569
    %297 = vst [vmem:[#allocation5] sm:$0xff] %v233
    %298 = vst [vmem:[#allocation5 + $0x8] sm:$0xff] %v234
    %299 = vst [vmem:[#allocation5 + $0x10] sm:$0xff] %v235
    %300 = vst [vmem:[#allocation5 + $0x18] sm:$0xff] %v236
    %301 = vst [vmem:[#allocation5 + $0x20] sm:$0xff] %v237
    %302 = vst [vmem:[#allocation5 + $0x28] sm:$0xff] %v238
    %303 = vst [vmem:[#allocation5 + $0x30] sm:$0xff] %v239
    %304 = vst [vmem:[#allocation5 + $0x38] sm:$0xff] %v240
    %305 = vst [vmem:[#allocation5 + $0x40] sm:$0xff] %v241
    %306 = vst [vmem:[#allocation5 + $0x48] sm:$0xff] %v242
    %307 = vst [vmem:[#allocation5 + $0x50] sm:$0xff] %v243
    %308 = vst [vmem:[#allocation5 + $0x58] sm:$0xff] %v244
    %309 = vst [vmem:[#allocation5 + $0x60] sm:$0xff] %v245
    %310 = vst [vmem:[#allocation5 + $0x68] sm:$0xff] %v246
    %311 = vst [vmem:[#allocation5 + $0x70] sm:$0xff] %v247
    %312 = vst [vmem:[#allocation5 + $0x78] sm:$0xff] %v248
    %313 = vst [vmem:[#allocation5 + $0x80] sm:$0xff] %v249
    %314 = vst [vmem:[#allocation5 + $0x88] sm:$0xff] %v250
    %315 = vst [vmem:[#allocation5 + $0x90] sm:$0xff] %v251
    %316 = vst [vmem:[#allocation5 + $0x98] sm:$0xff] %v252
    %317 = vst [vmem:[#allocation5 + $0xa0] sm:$0xff] %v253
    %318 = vst [vmem:[#allocation5 + $0xa8] sm:$0xff] %v254
    %319 = vst [vmem:[#allocation5 + $0xb0] sm:$0xff] %v255
    %320 = vst [vmem:[#allocation5 + $0xb8] sm:$0xff] %v256
    %321 = vst [vmem:[#allocation5 + $0xc0] sm:$0xff] %v257
    %322 = vst [vmem:[#allocation5 + $0xc8] sm:$0xff] %v258
    %323 = vst [vmem:[#allocation5 + $0xd0] sm:$0xff] %v259
    %324 = vst [vmem:[#allocation5 + $0xd8] sm:$0xff] %v260
    %325 = vst [vmem:[#allocation5 + $0xe0] sm:$0xff] %v261
    %326 = vst [vmem:[#allocation5 + $0xe8] sm:$0xff] %v262
    %327 = vst [vmem:[#allocation5 + $0xf0] sm:$0xff] %v263
    %328 = vst [vmem:[#allocation5 + $0xf8] sm:$0xff] %v264
    %329 = vst [vmem:[#allocation5 + $0x100] sm:$0xf] %v265
    %330 = vst [vmem:[#allocation5 + $0x108] sm:$0xf] %v266
    %331 = vst [vmem:[#allocation5 + $0x110] sm:$0xf] %v267
    %332 = vst [vmem:[#allocation5 + $0x118] sm:$0xf] %v268
    %333 = vst [vmem:[#allocation5 + $0x120] sm:$0xf] %v269
    %334 = vst [vmem:[#allocation5 + $0x128] sm:$0xf] %v270
    %335 = vst [vmem:[#allocation5 + $0x130] sm:$0xf] %v271
    %336 = vst [vmem:[#allocation5 + $0x138] sm:$0xf] %v272
    %337 = vst [vmem:[#allocation5 + $0x140] sm:$0xf] %v273
    %338 = vst [vmem:[#allocation5 + $0x148] sm:$0xf] %v274
    %339 = vst [vmem:[#allocation5 + $0x150] sm:$0xf] %v275
    %340 = vst [vmem:[#allocation5 + $0x158] sm:$0xf] %v276
    %341 = vst [vmem:[#allocation5 + $0x160] sm:$0xf] %v277
    %342 = vst [vmem:[#allocation5 + $0x168] sm:$0xf] %v278
    %343 = vst [vmem:[#allocation5 + $0x170] sm:$0xf] %v279
    %344 = vst [vmem:[#allocation5 + $0x178] sm:$0xf] %v280
    %345 = vst [vmem:[#allocation5 + $0x180] sm:$0xf] %v281
    %346 = vst [vmem:[#allocation5 + $0x188] sm:$0xf] %v282
    %347 = vst [vmem:[#allocation5 + $0x190] sm:$0xf] %v283
    %348 = vst [vmem:[#allocation5 + $0x198] sm:$0xf] %v284
    %349 = vst [vmem:[#allocation5 + $0x1a0] sm:$0xf] %v285
    %350 = vst [vmem:[#allocation5 + $0x1a8] sm:$0xf] %v286
    %351 = vst [vmem:[#allocation5 + $0x1b0] sm:$0xf] %v287
    %352 = vst [vmem:[#allocation5 + $0x1b8] sm:$0xf] %v288
    %353 = vst [vmem:[#allocation5 + $0x1c0] sm:$0xf] %v289
    %354 = vst [vmem:[#allocation5 + $0x1c8] sm:$0xf] %v290
    %355 = vst [vmem:[#allocation5 + $0x1d0] sm:$0xf] %v291
    %356 = vst [vmem:[#allocation5 + $0x1d8] sm:$0xf] %v292
    %357 = vst [vmem:[#allocation5 + $0x1e0] sm:$0xf] %v293
    %358 = vst [vmem:[#allocation5 + $0x1e8] sm:$0xf] %v294
    %359 = vst [vmem:[#allocation5 + $0x1f0] sm:$0xf] %v295
    %360 = vst [vmem:[#allocation5 + $0x1f8] sm:$0xf] %v296
    // Predicated region
    $region10: #{tpu_custom_call.1} parent=1 // pred_check
      _
    $region11: #{tpu_custom_call.1} parent=1 // pred_check_branch
      %362 = sbr.rel (0) target = $region13
    $region12: #{tpu_custom_call.1} parent=1 // pred_region
      %364 = vsyncadd [#allocation4], 0
      %s365 = sshll.u32 [#allocation5], 4
      %s366 = int_to_ptr.vmem [resolvable:$true] %s365
      %s367 = sshll.u32 %s1, 4
      %s368 = int_to_ptr.hbm [resolvable:$true] %s367
      %373 = dma.vmem_to_hbm [thread:$0]  %s366, 8192, %s368, [#allocation4], 4096, 4096, 256
    $region13: #{tpu_custom_call.1} parent=1 // pred_fallthru
      _
    // Predicated region
    $region14: #{tpu_custom_call.1} parent=1 // pred_check
      _
    $region15: #{tpu_custom_call.1} parent=1 // pred_check_branch
      %375 = sbr.rel (0) target = $region17
    $region16: #{tpu_custom_call.1} parent=1 // pred_region
      %377 = dma.done [#allocation4], 8192
    $region17: #{tpu_custom_call.1} parent=1 // pred_fallthru
      _
    %378 = vsyncpa [#allocation3], 1
    %379 = vsyncpa [#allocation4], 1

</llo_original>
